<compile_context>
chip_gen: v6e
topology: v6e:2x2x1
jax: 0.10.0
libtpu: 0.0.40
codegen_flags: <defaults>
</compile_context>

<pallas_src>
import functools
import math

import jax
import jax.numpy as jnp
import numpy as np
from jax.experimental import pallas as pl
from jax.experimental.pallas import tpu as pltpu

_LANE = 128
_SUBLANE = 8
_VMEM_BLOCK_BUDGET = 4 * 1024 * 1024     # target bytes per (double-buffered) input block
_MAX_ROW_TILE = 4096                     # keeps lane-padded out/scratch blocks small
_VMEM_LIMIT_BYTES = 32 * 1024 * 1024     # safe on v5e/v6e (128 MiB) and v7x (64 MiB phys)


def _round_up(x, m):
    return ((x + m - 1) // m) * m


# --------------------------------------------------------------------------------------
# Kernel helpers
# --------------------------------------------------------------------------------------
def _fake_quant_in(x, scale_x, on_int8_grid):
    """x -> int8-grid values (stay on the integer grid; no per-element divide)."""
    x = x.astype(jnp.float32) * scale_x
    if on_int8_grid:
        # producer guarantees |x*scale_x| <= 127 and integral: clip+round is identity
        return x
    return jnp.round(jnp.clip(x, -128.0, 127.0))


def _finalize(s1, s2, scales_ref, inv_n, inv_denom, clamp_var):
    """Integer-grid sums -> dequantized, fake-quantized variance."""
    scale_z = scales_ref[1]
    inv_sx2 = scales_ref[2]
    inv_sz = scales_ref[3]
    var_int = (s2 - s1 * s1 * inv_n) * inv_denom
    var = var_int * inv_sx2
    if clamp_var:                      # skip only for the unbiased n==1 NaN case
        var = jnp.maximum(var, 0.0)
    y_int = jnp.clip(jnp.round(var * scale_z), -128.0, 127.0)
    return y_int * inv_sz


# --------------------------------------------------------------------------------------
# Kernels
# --------------------------------------------------------------------------------------
def _iq_var_seg_kernel(scales_ref, x_ref, segmat_ref, o_ref, *,
                       inv_n, inv_denom, clamp_var, on_int8_grid):
    """Segmented lane reduction (N < 128, 128 % N == 0, natural layout, no transpose).

    x_ref:      (tr, 128) — each row packs 128//N size-N variance groups along lanes.
    segmat_ref: (128, 128//N) constant 0/1 segment matrix (resident, constant block idx).
    o_ref:      (tr, 128//N).
    scales_ref: SMEM f32[4] = [scale_x, scale_z, 1/scale_x^2, 1/scale_z].
    """
    x_int = _fake_quant_in(x_ref[...], scales_ref[0], on_int8_grid)
    s_mat = segmat_ref[...]
    # MXU (otherwise idle) does the per-group reductions -> minimal per-element VALU
    # work (matters on v7x where the roofline tips toward VALU-bound).
    s1 = jnp.dot(x_int, s_mat, preferred_element_type=jnp.float32)
    s2 = jnp.dot(x_int * x_int, s_mat, preferred_element_type=jnp.float32)
    o_ref[...] = _finalize(s1, s2, scales_ref, inv_n, inv_denom, clamp_var)


def _iq_var_rows_kernel(scales_ref, x_ref, o_ref, s1_acc, s2_acc, *,
                        n, tn, inv_n, inv_denom, clamp_var, on_int8_grid):
    """Natural row layout (N >= 128 or non-divisor N): reduce over lanes.

    Grid is (M_tiles, N_tiles) with the N axis last / 'arbitrary'; s1/s2 accumulate in
    VMEM scratch across the N tiles so huge N never blows the scoped VMEM limit.
    """
    k = pl.program_id(1)

    @pl.when(k == 0)
    def _():
        s1_acc[...] = jnp.zeros_like(s1_acc)
        s2_acc[...] = jnp.zeros_like(s2_acc)

    x_int = _fake_quant_in(x_ref[...], scales_ref[0], on_int8_grid)
    if n % tn != 0:
        # ragged last N block: zero OOB lanes so garbage cannot pollute valid rows
        col = k * tn + jax.lax.broadcasted_iota(jnp.int32, x_int.shape, 1)
        x_int = jnp.where(col < n, x_int, 0.0)

    s1_acc[...] += jnp.sum(x_int, axis=-1, keepdims=True)
    s2_acc[...] += jnp.sum(x_int * x_int, axis=-1, keepdims=True)

    @pl.when(k == pl.num_programs(1) - 1)
    def _():
        o_ref[...] = _finalize(s1_acc[...], s2_acc[...], scales_ref,
                               inv_n, inv_denom, clamp_var)


# --------------------------------------------------------------------------------------
# Wrapper
# --------------------------------------------------------------------------------------
def iq_var_pallas(x, dim, unbiased, scale_x, scale_z, *, input_on_int8_grid=False):
    """Fake-quant -> variance over `dim` -> fake-quant. Returns array with `dim` removed."""
    ndim = x.ndim
    d = dim % ndim
    n = int(x.shape[d])
    lead_shape = tuple(s for i, s in enumerate(x.shape) if i != d)
    m = int(np.prod(lead_shape)) if lead_shape else 1

    denom = (n - 1) if unbiased else n
    inv_n = 1.0 / float(n)
    # torch returns nan for unbiased var with a single element; match that.
    inv_denom = (1.0 / float(denom)) if denom > 0 else float("nan")
    clamp_var = math.isfinite(inv_denom)

    sx = float(scale_x)
    sz = float(scale_z)
    # Runtime SMEM scalars (values can change without recompiling the kernel).
    scales = jnp.array([sx, sz, 1.0 / (sx * sx), 1.0 / sz], dtype=jnp.float32)

    # Keep HBM layout: no astype, no pad; only a transpose copy if `dim` is interior.
    if d != ndim - 1:
        # TODO(synk): reduce interior dims via a (pre, n, post) 3-D block to avoid this copy.
        x2 = jnp.moveaxis(x, d, -1)
    else:
        x2 = x
    x2 = x2.reshape(m, n)                    # free reshape (row-major, dim already last)
    itemsize = jnp.dtype(x2.dtype).itemsize

    seg = (_LANE // n) if (n < _LANE and _LANE % n == 0) else 0
    if seg and m % seg == 0 and m >= seg:
        # ------------- segmented lane path (e.g. NCHW, dim=-1, N=16) ------------------
        rows = m // seg
        x3 = x2.reshape(rows, _LANE)         # still a pure reshape — no HBM copy
        tr = max(_SUBLANE,
                 min(_MAX_ROW_TILE,
                     (_VMEM_BLOCK_BUDGET // (_LANE * itemsize)) // _SUBLANE * _SUBLANE))
        if rows <= tr:
            # whole problem fits one block: keep >=2 grid steps so both v7x TCs get work
            # (per-step overhead ~0.35us is negligible on 1-TC v5e/v6e).
            tr = _round_up(-(-rows // 2), _SUBLANE) if rows >= 2 * _SUBLANE else rows
        grid = (pl.cdiv(rows, tr),)

        lane = np.arange(_LANE)
        segmat = jnp.asarray(lane[:, None] // n == np.arange(seg)[None, :],
                             dtype=jnp.float32)

        kernel = functools.partial(_iq_var_seg_kernel, inv_n=inv_n, inv_denom=inv_denom,
                                   clamp_var=clamp_var, on_int8_grid=input_on_int8_grid)
        out = pl.pallas_call(
            kernel,
            out_shape=jax.ShapeDtypeStruct((rows, seg), jnp.float32),
            grid=grid,
            in_specs=[
                pl.BlockSpec(memory_space=pltpu.MemorySpace.SMEM),     # scalar scales
                pl.BlockSpec((tr, _LANE), lambda i: (i, 0)),           # lane-dense input
                pl.BlockSpec((_LANE, seg), lambda i: (0, 0)),          # resident seg-matrix
            ],
            out_specs=pl.BlockSpec((tr, seg), lambda i: (i, 0)),
            compiler_params=pltpu.CompilerParams(
                dimension_semantics=("parallel",),
                vmem_limit_bytes=_VMEM_LIMIT_BYTES),
        )(scales, x3, segmat)
        y = out.reshape(m)
    else:
        # ------------- natural row path (N >= 128, or N not a divisor of 128) ---------
        max_tm = (_VMEM_BLOCK_BUDGET // (n * itemsize)) // _SUBLANE * _SUBLANE
        if max_tm >= _SUBLANE:
            tn = n                                           # whole reduction dim resident
            tm = min(max_tm, _MAX_ROW_TILE, _round_up(m, _SUBLANE))
            if m <= tm:
                tm = _round_up(-(-m // 2), _SUBLANE) if m >= 2 * _SUBLANE else m
        else:
            # very large N: tile the reduction dim (grid axis 1, 'arbitrary')
            tm = _SUBLANE * 16
            tn = max(_LANE, (_VMEM_BLOCK_BUDGET // (tm * itemsize)) // _LANE * _LANE)
        grid = (pl.cdiv(m, tm), pl.cdiv(n, tn))

        kernel = functools.partial(_iq_var_rows_kernel, n=n, tn=tn, inv_n=inv_n,
                                   inv_denom=inv_denom, clamp_var=clamp_var,
                                   on_int8_grid=input_on_int8_grid)
        out = pl.pallas_call(
            kernel,
            out_shape=jax.ShapeDtypeStruct((m, 1), jnp.float32),
            grid=grid,
            in_specs=[
                pl.BlockSpec(memory_space=pltpu.MemorySpace.SMEM),
                pl.BlockSpec((tm, tn), lambda i, k: (i, k)),
            ],
            out_specs=pl.BlockSpec((tm, 1), lambda i, k: (i, 0)),
            scratch_shapes=[pltpu.VMEM((tm, 1), jnp.float32),
                            pltpu.VMEM((tm, 1), jnp.float32)],
            compiler_params=pltpu.CompilerParams(
                dimension_semantics=("parallel", "arbitrary"),
                vmem_limit_bytes=_VMEM_LIMIT_BYTES),
        )(scales, x2)
        y = out[:, 0]

    return y.reshape(lead_shape)


# --------------------------------------------------------------------------------------
# Module glue (scalar bookkeeping mirrors iqVarLayer / iqVar.forward)
# --------------------------------------------------------------------------------------
class IqVarLayer:
    """JAX mirror of linger.ops.iqVarLayer (luna_quant platform)."""

    def __init__(self, data_bits=8):
        self.data_bits = data_bits
        self.scale_o = 0.0     # register_buffer('scale_o', zeros(1))
        self.running_o = 0.0   # register_buffer('running_o', zeros(1))
        self.training = True

    def __call__(self, x, scale_x, dim, unbiased, keepdim, local_scale_o,
                 quant_mode="qvalue", input_on_int8_grid=False):
        momentum = 0.1
        bound_value = 127.0

        if self.training:
            self.running_o = (self.running_o * (1.0 - momentum)
                              + momentum * (bound_value / local_scale_o))
            scale_z = local_scale_o
            if quant_mode == "qvalue":
                scale_z = math.pow(2.0, round(math.log2(scale_z)))
        else:
            assert self.running_o > 0, "Must at least training one batch"
            if quant_mode == "qvalue":
                scale_z = math.pow(2.0, round(math.log2(bound_value / self.running_o)))
            else:
                scale_z = float(np.float32(bound_value / self.running_o))
            self.scale_o = scale_z

        y = iq_var_pallas(x, dim, bool(unbiased), float(scale_x), float(scale_z),
                          input_on_int8_grid=input_on_int8_grid)
        if keepdim:
            y = jnp.expand_dims(y, dim % x.ndim)
        # returned tensor carries IQ scale = scale_z (8 bits) in the original module
        return y, scale_z


def _reference(x, scale_x, scale_z, dim, unbiased, keepdim):
    x_int = jnp.round(jnp.clip(x.astype(jnp.float32) * scale_x, -128.0, 127.0))
    x_deq = x_int / scale_x
    y = jnp.var(x_deq, axis=dim, ddof=1 if unbiased else 0, keepdims=keepdim)
    y_int = jnp.clip(jnp.round(y * scale_z), -128.0, 127.0)
    return y_int / scale_z


if __name__ == "__main__":
    scale_x = 127.0 / 4.0        # input IQTensor scale_data (synthetic)
    local_scale_o = 127.0 / 2.0  # local output scale (synthetic)

    # ---- case 1: NCHW input, var over W (N=16 -> segmented MXU lane path, no transpose)
    x = jax.random.normal(jax.random.PRNGKey(0), (2, 4, 16, 16), dtype=jnp.float32)
    layer = IqVarLayer(data_bits=8)
    y, scale_z = layer(x, scale_x, dim=-1, unbiased=True, keepdim=True,
                       local_scale_o=local_scale_o)
    y = jax.block_until_ready(y)
    y_ref = _reference(x, scale_x, scale_z, dim=-1, unbiased=True, keepdim=True)
    step = 1.0 / scale_z
    assert y.shape == (2, 4, 16, 1)
    assert np.allclose(np.asarray(y), np.asarray(y_ref), atol=1.5 * step), "mismatch (seg path)"

    # ---- case 2: last dim >= 128 -> natural row path (single resident N block) --------
    x2 = 0.5 * jax.random.normal(jax.random.PRNGKey(1), (2, 4, 8, 128), dtype=jnp.float32)
    layer2 = IqVarLayer(data_bits=8)
    y2, scale_z2 = layer2(x2, scale_x, dim=-1, unbiased=False, keepdim=False,
                          local_scale_o=local_scale_o)
    y2 = jax.block_until_ready(y2)
    y2_ref = _reference(x2, scale_x, scale_z2, dim=-1, unbiased=False, keepdim=False)
    step2 = 1.0 / scale_z2
    assert y2.shape == (2, 4, 8)
    assert np.allclose(np.asarray(y2), np.asarray(y2_ref), atol=1.5 * step2), "mismatch (row path)"

    # ---- case 3: ragged M (m=30 not tile-aligned) + small-N row-path fallback ---------
    x3 = jax.random.normal(jax.random.PRNGKey(2), (2, 3, 5, 16), dtype=jnp.float32)
    layer3 = IqVarLayer(data_bits=8)
    y3, scale_z3 = layer3(x3, scale_x, dim=-1, unbiased=True, keepdim=False,
                          local_scale_o=local_scale_o)
    y3 = jax.block_until_ready(y3)
    y3_ref = _reference(x3, scale_x, scale_z3, dim=-1, unbiased=True, keepdim=False)
    step3 = 1.0 / scale_z3
    assert y3.shape == (2, 3, 5)
    assert np.allclose(np.asarray(y3), np.asarray(y3_ref), atol=1.5 * step3), "mismatch (ragged)"

    print("KERNEL_OK")
</pallas_src>

<mosaic_0001>
module attributes {stable_mosaic.version = 11 : i64} {
  func.func @_iq_var_seg_kernel(%arg0: i32, %arg1: memref<4xf32, #tpu.memory_space<smem>>, %arg2: memref<8x128xf32, #tpu.memory_space<vmem>>, %arg3: memref<128x8xf32, #tpu.memory_space<vmem>>, %arg4: memref<8x8xf32, #tpu.memory_space<vmem>>) attributes {dimension_semantics = [#tpu.dimension_semantics<parallel>], iteration_bounds = array<i64: 2>, scalar_prefetch = 0 : i64, scratch_operands = 0 : i64, tpu.core_type = #tpu.core_type<tc>, window_params = [{transform_indices = @transform_0, window_bounds = array<i64: 4>}, {transform_indices = @transform_1, window_bounds = array<i64: 8, 128>}, {pipeline_mode = #tpu.pipeline_mode<synchronous>, transform_indices = @transform_2, window_bounds = array<i64: 128, 8>}, {transform_indices = @transform_3, window_bounds = array<i64: 8, 8>}]} {
    %c0 = arith.constant 0 : index
    %c0_0 = arith.constant 0 : index
    %0 = vector.load %arg2[%c0, %c0_0] : memref<8x128xf32, #tpu.memory_space<vmem>>, vector<8x128xf32>
    %c0_1 = arith.constant 0 : index
    %1 = memref.load %arg1[%c0_1] : memref<4xf32, #tpu.memory_space<smem>>
    %2 = vector.broadcast %1 : f32 to vector<8x128xf32>
    %3 = arith.mulf %0, %2 : vector<8x128xf32>
    %cst = arith.constant -1.280000e+02 : f32
    %cst_2 = arith.constant 1.270000e+02 : f32
    %4 = vector.broadcast %cst : f32 to vector<8x128xf32>
    %5 = arith.maximumf %4, %3 : vector<8x128xf32>
    %6 = vector.broadcast %cst_2 : f32 to vector<8x128xf32>
    %7 = arith.minimumf %6, %5 : vector<8x128xf32>
    %8 = math.roundeven %7 : vector<8x128xf32>
    %c0_3 = arith.constant 0 : index
    %c0_4 = arith.constant 0 : index
    %9 = vector.load %arg3[%c0_3, %c0_4] : memref<128x8xf32, #tpu.memory_space<vmem>>, vector<128x8xf32>
    %cst_5 = arith.constant dense<0.000000e+00> : vector<8x8xf32>
    %10 = tpu.matmul %8, %9, %cst_5 {dimension_numbers = #tpu.dot_dimension_numbers<[1], [0], [0], [1], [0, 0, 1, 1], [], []>} : vector<8x128xf32>, vector<128x8xf32>, vector<8x8xf32> -> vector<8x8xf32>
    %11 = arith.mulf %8, %8 : vector<8x128xf32>
    %cst_6 = arith.constant dense<0.000000e+00> : vector<8x8xf32>
    %12 = tpu.matmul %11, %9, %cst_6 {dimension_numbers = #tpu.dot_dimension_numbers<[1], [0], [0], [1], [0, 0, 1, 1], [], []>} : vector<8x128xf32>, vector<128x8xf32>, vector<8x8xf32> -> vector<8x8xf32>
    %c1 = arith.constant 1 : index
    %13 = memref.load %arg1[%c1] : memref<4xf32, #tpu.memory_space<smem>>
    %c2 = arith.constant 2 : index
    %14 = memref.load %arg1[%c2] : memref<4xf32, #tpu.memory_space<smem>>
    %c3 = arith.constant 3 : index
    %15 = memref.load %arg1[%c3] : memref<4xf32, #tpu.memory_space<smem>>
    %16 = arith.mulf %10, %10 : vector<8x8xf32>
    %cst_7 = arith.constant 6.250000e-02 : f32
    %17 = vector.broadcast %cst_7 : f32 to vector<8x8xf32>
    %18 = arith.mulf %16, %17 : vector<8x8xf32>
    %19 = arith.subf %12, %18 : vector<8x8xf32>
    %cst_8 = arith.constant 0.0666666701 : f32
    %20 = vector.broadcast %cst_8 : f32 to vector<8x8xf32>
    %21 = arith.mulf %19, %20 : vector<8x8xf32>
    %22 = vector.broadcast %14 : f32 to vector<8x8xf32>
    %23 = arith.mulf %21, %22 : vector<8x8xf32>
    %cst_9 = arith.constant 0.000000e+00 : f32
    %24 = vector.broadcast %cst_9 : f32 to vector<8x8xf32>
    %25 = arith.maximumf %23, %24 : vector<8x8xf32>
    %26 = vector.broadcast %13 : f32 to vector<8x8xf32>
    %27 = arith.mulf %25, %26 : vector<8x8xf32>
    %28 = math.roundeven %27 : vector<8x8xf32>
    %cst_10 = arith.constant -1.280000e+02 : f32
    %cst_11 = arith.constant 1.270000e+02 : f32
    %29 = vector.broadcast %cst_10 : f32 to vector<8x8xf32>
    %30 = arith.maximumf %29, %28 : vector<8x8xf32>
    %31 = vector.broadcast %cst_11 : f32 to vector<8x8xf32>
    %32 = arith.minimumf %31, %30 : vector<8x8xf32>
    %33 = vector.broadcast %15 : f32 to vector<8x8xf32>
    %34 = arith.mulf %32, %33 : vector<8x8xf32>
    %c0_12 = arith.constant 0 : index
    %c0_13 = arith.constant 0 : index
    %35 = vector.load %arg4[%c0_12, %c0_13] : memref<8x8xf32, #tpu.memory_space<vmem>>, vector<8x8xf32>
    tpu.vector_store %arg4[%c0_12, %c0_13], %34 {strides = array<i32>} : memref<8x8xf32, #tpu.memory_space<vmem>>, vector<8x8xf32>,
    return
  }
  func.func @transform_0(%arg0: i32) -> i32 {
    %c0_i32 = arith.constant 0 : i32
    %c0_i32_0 = arith.constant 0 : i32
    return %c0_i32 : i32
  }
  func.func @transform_1(%arg0: i32) -> (i32, i32) {
    %c0_i32 = arith.constant 0 : i32
    %c0_i32_0 = arith.constant 0 : i32
    return %arg0, %c0_i32 : i32, i32
  }
  func.func @transform_2(%arg0: i32) -> (i32, i32) {
    %c0_i32 = arith.constant 0 : i32
    %c0_i32_0 = arith.constant 0 : i32
    %c0_i32_1 = arith.constant 0 : i32
    return %c0_i32, %c0_i32_0 : i32, i32
  }
  func.func @transform_3(%arg0: i32) -> (i32, i32) {
    %c0_i32 = arith.constant 0 : i32
    %c0_i32_0 = arith.constant 0 : i32
    return %arg0, %c0_i32 : i32, i32
  }
}

</mosaic_0001>

<llo_original>
// kernel: tpu_custom_call.1
$region0: #{tpu_custom_call.1}
  #allocation0 [shape = 'u32[]', space=smem, size = 0x4, offset = 0x4, fixed_abs, tag = 'smem constant byte address 0x4 - core index']
  #allocation1 [shape = 'u32[144,128]{1,0:T(1,128)}', space=vmem, size = 0x12000, scoped, tag = 'internal scratch']
  %s0 = inlined_call_operand.vmem [shape: f32[4], index: 0, kind: input, shape index: {}]
  %s1 = inlined_call_operand.vmem [shape: f32[16,128], index: 1, kind: input, shape index: {}]
  %s2 = inlined_call_operand.vmem [shape: f32[128,8], index: 2, kind: input, shape index: {}]
  %s3 = inlined_call_operand.vmem [shape: f32[16,8], index: 3, kind: output, shape index: {}]
  %s4 = sld [smem:[#allocation0]]
  $region49: #{tpu_custom_call.1} parent=0
    _
  %s6 = ssub.s32 1, %s4
  %s7 = scalar_select 0, %s6, %s4
  $region1: #{tpu_custom_call.1} parent=0
    #allocation2 [shape = 'u8[512]{0}', space=smem, size = 0x200, scoped, tag = 'input window, operand 0, single buffered']
    #allocation3 [shape = 's32[2]{0}', space=sflag, size = 0x8, scoped, tag = 'scoped memory for tpu_custom_call.1']
    %8 = vsyncpa [#allocation3], 0
    loop: start=0, step=1, limit=4
    $region2: #{tpu_custom_call.1} parent=1 // loop_pre_header
      _
    $region3: #{tpu_custom_call.1} parent=1 // loop_header
      %s10 = sphi 0, %s14
      %p11 = scmp.ge.s32.totalorder %s10, 4
      %s18 = sphi 0, %s18
      %s20 = sphi 0, %s18
      %s21 = sphi 0, %s20
      %s35 = sphi 0, %s21
      %s41 = sphi 0, %s43
      %s44 = sphi 0, %s41
      %s45 = sphi 0, %s44
      %s61 = sphi 0, %s45
      %s65 = sphi 0, %s65
      %s67 = sphi 0, %s65
      %s68 = sphi 0, %s67
      %s82 = sphi 0, %s68
      %s88 = sphi 0, %s90
      %s91 = sphi 0, %s88
      %s92 = sphi 0, %s91
      %s108 = sphi 0, %s92
    $region4: #{tpu_custom_call.1} parent=1 // loop_header_branch
      %13 = sbr.rel (%p11) target = $region8
    $region5: #{tpu_custom_call.1} parent=1 // loop_body
      %s15 = ssub.s32 %s10, 1
      %s16 = ssub.s32 %s10, 2
      %s17 = sadd.s32 %s10, 1
      %s19 = sadd.s32 %s18, 1
      %p22 = scmp.eq.s32.totalorder %s10, 1
      %p23 = scmp.ne.s32.totalorder %s18, %s20
      %p24 = scmp.eq.s32.totalorder %s10, 0
      %p25 = por %p23, %p24
      %p26 = scmp.ne.s32.totalorder %s18, %s20
      %p27 = scmp.eq.s32.totalorder %s15, 1
      %p28 = por %p26, %p27
      %p29 = scmp.ne.s32.totalorder %s20, %s21
      %p30 = scmp.eq.s32.totalorder %s15, 0
      %p31 = por %p29, %p30
      %p32 = scmp.ne.s32.totalorder %s20, %s21
      %p33 = scmp.eq.s32.totalorder %s16, 1
      %p34 = por %p32, %p33
      %p36 = scmp.ne.s32.totalorder %s21, %s35
      %p37 = scmp.eq.s32.totalorder %s16, 0
      %p38 = por %p36, %p37
      %s39 = ssub.s32 %s10, %s17
      %p40 = scmp.eq.s32.totalorder %s39, 0
      %s42 = sadd.s32 %s41, 1
      %s43 = scalar_select %p40, %s41, %s42
      %p46 = pneg %p40
      %p47 = scmp.eq.s32.totalorder %s10, 1
      %p48 = por %p46, %p47
      %p49 = scmp.ne.s32.totalorder %s41, %s44
      %p50 = scmp.eq.s32.totalorder %s10, 0
      %p51 = por %p49, %p50
      %p52 = scmp.ne.s32.totalorder %s41, %s44
      %p53 = scmp.eq.s32.totalorder %s15, 1
      %p54 = por %p52, %p53
      %p55 = scmp.ne.s32.totalorder %s44, %s45
      %p56 = scmp.eq.s32.totalorder %s15, 0
      %p57 = por %p55, %p56
      %p58 = scmp.ne.s32.totalorder %s44, %s45
      %p59 = scmp.eq.s32.totalorder %s16, 1
      %p60 = por %p58, %p59
      %p62 = scmp.ne.s32.totalorder %s45, %s61
      %p63 = scmp.eq.s32.totalorder %s16, 0
      %p64 = por %p62, %p63
      %s66 = sadd.s32 %s65, 1
      %p69 = scmp.eq.s32.totalorder %s10, 1
      %p70 = scmp.ne.s32.totalorder %s65, %s67
      %p71 = scmp.eq.s32.totalorder %s10, 0
      %p72 = por %p70, %p71
      %p73 = scmp.ne.s32.totalorder %s65, %s67
      %p74 = scmp.eq.s32.totalorder %s15, 1
      %p75 = por %p73, %p74
      %p76 = scmp.ne.s32.totalorder %s67, %s68
      %p77 = scmp.eq.s32.totalorder %s15, 0
      %p78 = por %p76, %p77
      %p79 = scmp.ne.s32.totalorder %s67, %s68
      %p80 = scmp.eq.s32.totalorder %s16, 1
      %p81 = por %p79, %p80
      %p83 = scmp.ne.s32.totalorder %s68, %s82
      %p84 = scmp.eq.s32.totalorder %s16, 0
      %p85 = por %p83, %p84
      %s86 = ssub.s32 %s10, %s17
      %p87 = scmp.eq.s32.totalorder %s86, 0
      %s89 = sadd.s32 %s88, 1
      %s90 = scalar_select %p87, %s88, %s89
      %p93 = pneg %p87
      %p94 = scmp.eq.s32.totalorder %s10, 1
      %p95 = por %p93, %p94
      %p96 = scmp.ne.s32.totalorder %s88, %s91
      %p97 = scmp.eq.s32.totalorder %s10, 0
      %p98 = por %p96, %p97
      %p99 = scmp.ne.s32.totalorder %s88, %s91
      %p100 = scmp.eq.s32.totalorder %s15, 1
      %p101 = por %p99, %p100
      %p102 = scmp.ne.s32.totalorder %s91, %s92
      %p103 = scmp.eq.s32.totalorder %s15, 0
      %p104 = por %p102, %p103
      %p105 = scmp.ne.s32.totalorder %s91, %s92
      %p106 = scmp.eq.s32.totalorder %s16, 1
      %p107 = por %p105, %p106
      %p109 = scmp.ne.s32.totalorder %s92, %s108
      %p110 = scmp.eq.s32.totalorder %s16, 0
      %p111 = por %p109, %p110
      %p112 = scmp.le.s32.totalorder 1, %s10
      %p113 = scmp.lt.s32.totalorder %s10, 3
      %p114 = pnand %p112, %p113
      %p115 = pneg %p114
      // Predicated region
      $region9: #{tpu_custom_call.1} parent=5 // pred_check
        _
      $region10: #{tpu_custom_call.1} parent=5 // pred_check_branch
        %117 = sbr.rel (%p114) target = $region12
      $region11: #{tpu_custom_call.1} parent=5 // pred_region
        %s118 = ssub.s32 %s10, 1
        // Predicated region
        $region13: #{tpu_custom_call.1} parent=11 // pred_check
          %p119 = pneg %p31
        $region14: #{tpu_custom_call.1} parent=11 // pred_check_branch
          %121 = sbr.rel (%p119) target = $region16
        $region15: #{tpu_custom_call.1} parent=11 // pred_region
          %s123 = ssub.s32 16, 16
          %124 = vsyncadd [#allocation3], %s123
          %s126 = sshll.u32 %s0, 4
          %s127 = int_to_ptr.vmem [resolvable:$true] %s126
          %129 = dma.vmem_to_smem %s127, 16, [#allocation2], [#allocation3]
        $region16: #{tpu_custom_call.1} parent=11 // pred_fallthru
          _
        // Predicated region
        $region17: #{tpu_custom_call.1} parent=11 // pred_check
          %p130 = pneg %p78
        $region18: #{tpu_custom_call.1} parent=11 // pred_check_branch
          %132 = sbr.rel (%p130) target = $region20
        $region19: #{tpu_custom_call.1} parent=11 // pred_region
          _
        $region20: #{tpu_custom_call.1} parent=11 // pred_fallthru
          _
      $region12: #{tpu_custom_call.1} parent=5 // pred_fallthru
        _
      %p133 = scmp.lt.s32.totalorder %s10, 2
      // Predicated region
      $region21: #{tpu_custom_call.1} parent=5 // pred_check
        %p134 = pneg %p133
      $region22: #{tpu_custom_call.1} parent=5 // pred_check_branch
        %136 = sbr.rel (%p134) target = $region24
      $region23: #{tpu_custom_call.1} parent=5 // pred_region
        // Predicated region
        $region25: #{tpu_custom_call.1} parent=23 // pred_check
          %p137 = pneg %p51
        $region26: #{tpu_custom_call.1} parent=23 // pred_check_branch
          %139 = sbr.rel (%p137) target = $region28
        $region27: #{tpu_custom_call.1} parent=23 // pred_region
          %p140 = scmp.lt.s32.totalorder %s10, 1
          %s141 = scalar_select %p140, %s10, 1
          %s142 = smul.addr %s141, 8
          %s143 = scalar_lea.vmem %s1, %s142
        $region28: #{tpu_custom_call.1} parent=23 // pred_fallthru
          _
      $region24: #{tpu_custom_call.1} parent=5 // pred_fallthru
        _
      %p144 = scmp.le.s32.totalorder 1, %s10
      %p145 = scmp.lt.s32.totalorder %s10, 3
      %p146 = pnand %p144, %p145
      %p147 = pneg %p146
      // Predicated region
      $region29: #{tpu_custom_call.1} parent=5 // pred_check
        _
      $region30: #{tpu_custom_call.1} parent=5 // pred_check_branch
        %149 = sbr.rel (%p146) target = $region32
      $region31: #{tpu_custom_call.1} parent=5 // pred_region
        %s150 = ssub.s32 %s10, 1
        // Predicated region
        $region33: #{tpu_custom_call.1} parent=31 // pred_check
          %p151 = pneg %p31
        $region34: #{tpu_custom_call.1} parent=31 // pred_check_branch
          %153 = sbr.rel (%p151) target = $region36
        $region35: #{tpu_custom_call.1} parent=31 // pred_region
          %154 = dma.done [#allocation3], 16
        $region36: #{tpu_custom_call.1} parent=31 // pred_fallthru
          _
        %155 = sfence
        %p156 = pneg %p31
        %p157 = pneg %p28
        %p158 = scmp.lt.s32.totalorder %s15, 1
        %s159 = scalar_select %p158, %s15, 1
        %s160 = smul.addr %s159, 8
        %s161 = scalar_lea.vmem %s1, %s160
        %p162 = pneg %p57
        %p163 = pneg %p54
        %p164 = pneg %p78
        %p165 = pneg %p75
        %p166 = pneg %p104
        %p167 = pneg %p101
        %p168 = scmp.lt.s32.totalorder %s15, 1
        %s169 = scalar_select %p168, %s15, 1
        %s170 = smul.addr %s169, 8
        %s171 = scalar_lea.vmem %s3, %s170
        %p172 = scmp.lt.s32.totalorder %s15, 1
        %s173 = scalar_select %p172, %s15, 1
        %s174 = smul.addr %s173, 8
        %s175 = scalar_lea.vmem %s1, %s174
        %p176 = scmp.lt.s32.totalorder %s15, 1
        %s177 = scalar_select %p176, %s15, 1
        %s178 = smul.addr %s177, 8
        %s179 = scalar_lea.vmem %s3, %s178
        %v180 = vld [vmem:[%s175] sm:$0xff]
        %s181 = sld [smem:[#allocation2]]
        %v182 = vstv %s181
        %v183 = vmul.f32 %v180, %v182
        %v184 = vmax.f32 %v183, -128.0
        %v185 = vmin.f32 %v184, 127.0
        %v186 = vround.ne.pseudo %v185
        %v187 = vld [vmem:[%s2] sm:$0xff]
        %v188 = vld [vmem:[%s2 + $0x8] sm:$0xff]
        %v189 = vld [vmem:[%s2 + $0x10] sm:$0xff]
        %v190 = vld [vmem:[%s2 + $0x18] sm:$0xff]
        %v191 = vld [vmem:[%s2 + $0x20] sm:$0xff]
        %v192 = vld [vmem:[%s2 + $0x28] sm:$0xff]
        %v193 = vld [vmem:[%s2 + $0x30] sm:$0xff]
        %v194 = vld [vmem:[%s2 + $0x38] sm:$0xff]
        %v195 = vld [vmem:[%s2 + $0x40] sm:$0xff]
        %v196 = vld [vmem:[%s2 + $0x48] sm:$0xff]
        %v197 = vld [vmem:[%s2 + $0x50] sm:$0xff]
        %v198 = vld [vmem:[%s2 + $0x58] sm:$0xff]
        %v199 = vld [vmem:[%s2 + $0x60] sm:$0xff]
        %v200 = vld [vmem:[%s2 + $0x68] sm:$0xff]
        %v201 = vld [vmem:[%s2 + $0x70] sm:$0xff]
        %v202 = vld [vmem:[%s2 + $0x78] sm:$0xff]
        %203 = vmatprep.subr.mxu0 0.0
        %204 = vmatpush1.msra.mxu0 %v202
        %205 = vmatprep.subr.mxu0 0.0
        %206 = vmatpush1.msra.mxu0 %v201
        %207 = vmatprep.subr.mxu0 0.0
        %208 = vmatpush1.msra.mxu0 %v200
        %209 = vmatprep.subr.mxu0 0.0
        %210 = vmatpush1.msra.mxu0 %v199
        %211 = vmatprep.subr.mxu0 0.0
        %212 = vmatpush1.msra.mxu0 %v198
        %213 = vmatprep.subr.mxu0 0.0
        %214 = vmatpush1.msra.mxu0 %v197
        %215 = vmatprep.subr.mxu0 0.0
        %216 = vmatpush1.msra.mxu0 %v196
        %217 = vmatprep.subr.mxu0 0.0
        %218 = vmatpush1.msra.mxu0 %v195
        %219 = vmatprep.subr.mxu0 0.0
        %220 = vmatpush1.msra.mxu0 %v194
        %221 = vmatprep.subr.mxu0 0.0
        %222 = vmatpush1.msra.mxu0 %v193
        %223 = vmatprep.subr.mxu0 0.0
        %224 = vmatpush1.msra.mxu0 %v192
        %225 = vmatprep.subr.mxu0 0.0
        %226 = vmatpush1.msra.mxu0 %v191
        %227 = vmatprep.subr.mxu0 0.0
        %228 = vmatpush1.msra.mxu0 %v190
        %229 = vmatprep.subr.mxu0 0.0
        %230 = vmatpush1.msra.mxu0 %v189
        %231 = vmatprep.subr.mxu0 0.0
        %232 = vmatpush1.msra.mxu0 %v188
        %233 = vmatprep.subr.mxu0 0.0
        %234 = vmatpush1.msra.mxu0 %v187
        %235 = vmatprep.subr.mxu0 0.0
        %236 = vmatpush2.msra.mxu0 0.0
        %237 = vmatprep.subr.mxu0 0.0
        %238 = vmatpush2.msra.mxu0 0.0
        %239 = vmatprep.subr.mxu0 0.0
        %240 = vmatpush2.msra.mxu0 0.0
        %241 = vmatprep.subr.mxu0 0.0
        %242 = vmatpush2.msra.mxu0 0.0
        %243 = vmatprep.subr.mxu0 0.0
        %244 = vmatpush2.msra.mxu0 0.0
        %245 = vmatprep.subr.mxu0 0.0
        %246 = vmatpush2.msra.mxu0 0.0
        %247 = vmatprep.subr.mxu0 0.0
        %248 = vmatpush2.msra.mxu0 0.0
        %249 = vmatprep.subr.mxu0 0.0
        %250 = vmatpush2.msra.mxu0 0.0
        %251 = vmatprep.subr.mxu0 0.0
        %252 = vmatpush2.msra.mxu0 0.0
        %253 = vmatprep.subr.mxu0 0.0
        %254 = vmatpush2.msra.mxu0 0.0
        %255 = vmatprep.subr.mxu0 0.0
        %256 = vmatpush2.msra.mxu0 0.0
        %257 = vmatprep.subr.mxu0 0.0
        %258 = vmatpush2.msra.mxu0 0.0
        %259 = vmatprep.subr.mxu0 0.0
        %260 = vmatpush2.msra.mxu0 0.0
        %261 = vmatprep.subr.mxu0 0.0
        %262 = vmatpush2.msra.mxu0 0.0
        %263 = vmatprep.subr.mxu0 0.0
        %264 = vmatpush2.msra.mxu0 0.0
        %265 = vmatprep.subr.mxu0 0.0
        %266 = vmatpush2.msra.mxu0 0.0
        %267 = vmatprep.mubr.f32.mxu0 0.0
        %268 = vmatmul.mubr.f32.gmra.mxu0 %v186
        %v269 = vpop.f32.mrf.mxu0
        %v270 = vadd.f32 0.0, %v269
        %v271 = vpop.f32.mrf.mxu0
        %272 = vdwg.mxu0
        %v273 = vmul.f32 %v186, %v186
        %274 = vmatprep.subr.mxu0 0.0
        %275 = vmatpush1.msra.mxu0 %v202
        %276 = vmatprep.subr.mxu0 0.0
        %277 = vmatpush1.msra.mxu0 %v201
        %278 = vmatprep.subr.mxu0 0.0
        %279 = vmatpush1.msra.mxu0 %v200
        %280 = vmatprep.subr.mxu0 0.0
        %281 = vmatpush1.msra.mxu0 %v199
        %282 = vmatprep.subr.mxu0 0.0
        %283 = vmatpush1.msra.mxu0 %v198
        %284 = vmatprep.subr.mxu0 0.0
        %285 = vmatpush1.msra.mxu0 %v197
        %286 = vmatprep.subr.mxu0 0.0
        %287 = vmatpush1.msra.mxu0 %v196
        %288 = vmatprep.subr.mxu0 0.0
        %289 = vmatpush1.msra.mxu0 %v195
        %290 = vmatprep.subr.mxu0 0.0
        %291 = vmatpush1.msra.mxu0 %v194
        %292 = vmatprep.subr.mxu0 0.0
        %293 = vmatpush1.msra.mxu0 %v193
        %294 = vmatprep.subr.mxu0 0.0
        %295 = vmatpush1.msra.mxu0 %v192
        %296 = vmatprep.subr.mxu0 0.0
        %297 = vmatpush1.msra.mxu0 %v191
        %298 = vmatprep.subr.mxu0 0.0
        %299 = vmatpush1.msra.mxu0 %v190
        %300 = vmatprep.subr.mxu0 0.0
        %301 = vmatpush1.msra.mxu0 %v189
        %302 = vmatprep.subr.mxu0 0.0
        %303 = vmatpush1.msra.mxu0 %v188
        %304 = vmatprep.subr.mxu0 0.0
        %305 = vmatpush1.msra.mxu0 %v187
        %306 = vmatprep.subr.mxu0 0.0
        %307 = vmatpush2.msra.mxu0 0.0
        %308 = vmatprep.subr.mxu0 0.0
        %309 = vmatpush2.msra.mxu0 0.0
        %310 = vmatprep.subr.mxu0 0.0
        %311 = vmatpush2.msra.mxu0 0.0
        %312 = vmatprep.subr.mxu0 0.0
        %313 = vmatpush2.msra.mxu0 0.0
        %314 = vmatprep.subr.mxu0 0.0
        %315 = vmatpush2.msra.mxu0 0.0
        %316 = vmatprep.subr.mxu0 0.0
        %317 = vmatpush2.msra.mxu0 0.0
        %318 = vmatprep.subr.mxu0 0.0
        %319 = vmatpush2.msra.mxu0 0.0
        %320 = vmatprep.subr.mxu0 0.0
        %321 = vmatpush2.msra.mxu0 0.0
        %322 = vmatprep.subr.mxu0 0.0
        %323 = vmatpush2.msra.mxu0 0.0
        %324 = vmatprep.subr.mxu0 0.0
        %325 = vmatpush2.msra.mxu0 0.0
        %326 = vmatprep.subr.mxu0 0.0
        %327 = vmatpush2.msra.mxu0 0.0
        %328 = vmatprep.subr.mxu0 0.0
        %329 = vmatpush2.msra.mxu0 0.0
        %330 = vmatprep.subr.mxu0 0.0
        %331 = vmatpush2.msra.mxu0 0.0
        %332 = vmatprep.subr.mxu0 0.0
        %333 = vmatpush2.msra.mxu0 0.0
        %334 = vmatprep.subr.mxu0 0.0
        %335 = vmatpush2.msra.mxu0 0.0
        %336 = vmatprep.subr.mxu0 0.0
        %337 = vmatpush2.msra.mxu0 0.0
        %338 = vmatprep.mubr.f32.mxu0 0.0
        %339 = vmatmul.mubr.f32.gmra.mxu0 %v273
        %v340 = vpop.f32.mrf.mxu0
        %v341 = vadd.f32 0.0, %v340
        %v342 = vpop.f32.mrf.mxu0
        %343 = vdwg.mxu0
        %s344 = sld [smem:[#allocation2 + $0x1]]
        %s345 = sld [smem:[#allocation2 + $0x2]]
        %s346 = sld [smem:[#allocation2 + $0x3]]
        %v347 = vmul.f32 %v270, %v270
        %v348 = vmul.f32 %v347, 0.0625
        %v349 = vsub.f32 %v341, %v348
        %v350 = vmul.f32 %v349, 0.06666667
        %v351 = vstv %s345
        %v352 = vmul.f32 %v350, %v351
        %v353 = vmax.f32 %v352, 0.0
        %v354 = vstv %s344
        %v355 = vmul.f32 %v353, %v354
        %v356 = vround.ne.pseudo %v355
        %v357 = vmax.f32 %v356, -128.0
        %v358 = vmin.f32 %v357, 127.0
        %v359 = vstv %s346
        %v360 = vmul.f32 %v358, %v359
        %vm361 = vcmask 64512
        %362 = vst.msk [vmem:[%s179] sm:$0xff] %vm361, %v360
        %p363 = scmp.lt.s32.totalorder %s15, 1
        %s364 = scalar_select %p363, %s15, 1
        %s365 = smul.addr %s364, 8
        %s366 = scalar_lea.vmem %s3, %s365
        // Predicated region
        $region37: #{tpu_custom_call.1} parent=31 // pred_check
          %p367 = pneg %p101
        $region38: #{tpu_custom_call.1} parent=31 // pred_check_branch
          %369 = sbr.rel (%p367) target = $region40
        $region39: #{tpu_custom_call.1} parent=31 // pred_region
          _
        $region40: #{tpu_custom_call.1} parent=31 // pred_fallthru
          _
      $region32: #{tpu_custom_call.1} parent=5 // pred_fallthru
        _
      %p370 = scmp.le.s32.totalorder 2, %s10
      // Predicated region
      $region41: #{tpu_custom_call.1} parent=5 // pred_check
        %p371 = pneg %p370
      $region42: #{tpu_custom_call.1} parent=5 // pred_check_branch
        %373 = sbr.rel (%p371) target = $region44
      $region43: #{tpu_custom_call.1} parent=5 // pred_region
        %s374 = ssub.s32 %s10, 2
        // Predicated region
        $region45: #{tpu_custom_call.1} parent=43 // pred_check
          %p375 = pneg %p107
        $region46: #{tpu_custom_call.1} parent=43 // pred_check_branch
          %377 = sbr.rel (%p375) target = $region48
        $region47: #{tpu_custom_call.1} parent=43 // pred_region
          %p378 = scmp.lt.s32.totalorder %s16, 1
          %s379 = scalar_select %p378, %s16, 1
          %s380 = smul.addr %s379, 8
          %s381 = scalar_lea.vmem %s3, %s380
        $region48: #{tpu_custom_call.1} parent=43 // pred_fallthru
          _
      $region44: #{tpu_custom_call.1} parent=5 // pred_fallthru
        _
    $region6: #{tpu_custom_call.1} parent=1 // loop_footer
      %s14 = sadd.s32 1, %s10
    $region7: #{tpu_custom_call.1} parent=1 // loop_footer_branch
      %9 = sbr.rel target = $region3
    $region8: #{tpu_custom_call.1} parent=1 // loop_exit
      _
    %382 = vsyncpa [#allocation3], 1
    %s383 = scalar_lea.sflag [#allocation3], 1
    %384 = vsyncpa %s383, 1

</llo_original>
